<compile_context>
chip_gen: v7x
topology: tpu7x:2x2x1
jax: 0.10.0
libtpu: 0.0.40
codegen_flags: <defaults>
</compile_context>

<pallas_src>
import jax
import jax.numpy as jnp
from jax.experimental import pallas as pl
from jax.experimental.pallas import tpu as pltpu

HIDDEN = 20     # nn.RNN(hidden_size=20)
FEATURES = 3    # nn.RNN(input_size=3)


def _decision_rnn_kernel(x_ref, pv_ref, wih_ref, whh_ref, b_ref,
                         conv_ref, mask_ref, gather_ref, shift_ref, cb_ref,
                         out_ref):
    # x_ref:     [W*N, F]   time-major; N = B*A rows per step, row = b*A + a
    # pv_ref:    [B, A]     previous portfolio weights
    # wih_ref:   [F, H]     W_ih^T (shared across assets)
    # whh_ref:   [H, H]     W_hh^T
    # b_ref:     [1, H]     b_ih + b_hh
    # conv_ref:  [H, 1]     1x1-conv weights over the 20 hidden channels
    # mask_ref:  [N, A+1]   mask[r, (r % A)+1] = 1, col 0 = 0   (scatter -> asset col)
    # gather_ref:[B, N]     gather[b, r] = 1 iff r // A == b    (collect rows of batch b)
    # shift_ref: [A, A+1]   shift[a, a+1] = conv_w[H] (prev-pv channel weight), col 0 = 0
    # cb_ref:    [1, A+1]   col 0 = 0 (cash), cols 1.. = conv bias
    # out_ref:   [B, A+1]   softmax portfolio (single store)
    n = mask_ref.shape[0]              # B*A
    n_steps = x_ref.shape[0] // n      # W (static)

    # Hoisted input projection for every (timestep, batch, asset) row: one MXU
    # matmul, kept as a traced value (no VMEM scratch round-trip).
    proj = jnp.dot(x_ref[...], wih_ref[...],
                   preferred_element_type=jnp.float32) + b_ref[...]

    whh = whh_ref[...]
    h = jnp.zeros((n, whh.shape[0]), jnp.float32)
    # Fully-unrolled recurrence (W is small & static); the serial chain per
    # step is one [N,H]x[H,H] matmul + EUP tanh.  Slices land at multiples of
    # N (= 8 here), i.e. sublane-tile aligned.
    for t in range(n_steps):
        pre = proj[t * n:(t + 1) * n, :] + jnp.dot(
            h, whh, preferred_element_type=jnp.float32)
        h = jnp.tanh(pre)

    # Per-(b,a) score from the final hidden state: [N, 1].
    s = jnp.dot(h, conv_ref[...], preferred_element_type=jnp.float32)
    # Scatter each row's scalar score into its asset column, then sum the rows
    # belonging to the same batch -> [B, A+1] (column 0 stays exactly 0 = cash).
    scores = jnp.dot(gather_ref[...], s * mask_ref[...],
                     preferred_element_type=jnp.float32)
    pv_term = jnp.dot(pv_ref[...], shift_ref[...],
                      preferred_element_type=jnp.float32)
    logits = scores + pv_term + cb_ref[...]

    m = jnp.max(logits, axis=1, keepdims=True)
    e = jnp.exp(logits - m)
    # Exact normalization so output rows sum to 1 (previous approx reciprocal
    # broke the simplex constraint).
    out_ref[...] = e / jnp.sum(e, axis=1, keepdims=True)


def pack_params(params, batch_size, num_assets):
    """Parameter-only packing: call ONCE per parameter set / problem shape."""
    H, F, A, B = HIDDEN, FEATURES, num_assets, batch_size
    N = B * A
    conv_w = params["conv_w"].reshape(-1).astype(jnp.float32)           # [H+1]
    rows = jnp.arange(N)
    mask = (rows[:, None] % A + 1
            == jnp.arange(A + 1)[None, :]).astype(jnp.float32)          # [N, A+1]
    gather = (rows[None, :] // A
              == jnp.arange(B)[:, None]).astype(jnp.float32)            # [B, N]
    shift = (jnp.arange(A)[:, None] + 1
             == jnp.arange(A + 1)[None, :]).astype(jnp.float32) * conv_w[H]  # [A, A+1]
    cb = jnp.concatenate(
        [jnp.zeros((1, 1), jnp.float32),
         jnp.full((1, A), params["conv_b"][0], jnp.float32)], axis=1)   # [1, A+1]
    return dict(
        wih=params["w_ih"].T.astype(jnp.float32),                       # [F, H]
        whh=params["w_hh"].T.astype(jnp.float32),                       # [H, H]
        bias=(params["b_ih"] + params["b_hh"]).astype(jnp.float32)[None, :],  # [1, H]
        conv=conv_w[:H][:, None],                                       # [H, 1]
        mask=mask, gather=gather, shift=shift, cb=cb)


def decision_network_rnn(obs, prev_pv, packed):
    """obs: [B, F, A, W] f32, prev_pv: [B, A] f32, packed = pack_params(...)."""
    B, F, A, W = obs.shape
    assert F == FEATURES
    H = HIDDEN
    N = B * A

    # [B,F,A,W] -> [W,B,A,F] -> [W*N, F]   (row within a timestep slab = b*A + a)
    x2d = jnp.transpose(obs, (3, 0, 2, 1)).astype(jnp.float32).reshape(W * N, F)
    pv = prev_pv.astype(jnp.float32)

    flops = (2 * W * N * F * H          # hoisted input projection
             + 2 * W * N * H * H        # recurrence
             + 2 * N * H                # hidden -> per-asset score
             + 2 * B * N * (A + 1)      # batch gather matmul
             + 2 * B * A * (A + 1))     # prev_pv shift matmul
    transcendentals = W * N * H + B * (A + 1)       # tanh + exp
    bytes_accessed = 4 * (x2d.size + pv.size + B * (A + 1)
                          + sum(int(v.size) for v in packed.values()))

    vmem = pl.BlockSpec(memory_space=pltpu.MemorySpace.VMEM)
    return pl.pallas_call(
        _decision_rnn_kernel,
        out_shape=jax.ShapeDtypeStruct((B, A + 1), jnp.float32),
        in_specs=[vmem] * 10,
        out_specs=vmem,
        cost_estimate=pl.CostEstimate(flops=flops,
                                      transcendentals=transcendentals,
                                      bytes_accessed=bytes_accessed),
    )(x2d, pv, packed["wih"], packed["whh"], packed["bias"],
      packed["conv"], packed["mask"], packed["gather"],
      packed["shift"], packed["cb"])


def init_params(key):
    ks = jax.random.split(key, 6)
    s = 1.0 / jnp.sqrt(HIDDEN)
    return dict(
        w_ih=jax.random.uniform(ks[0], (HIDDEN, FEATURES), jnp.float32, -s, s),
        w_hh=jax.random.uniform(ks[1], (HIDDEN, HIDDEN), jnp.float32, -s, s),
        b_ih=jax.random.uniform(ks[2], (HIDDEN,), jnp.float32, -s, s),
        b_hh=jax.random.uniform(ks[3], (HIDDEN,), jnp.float32, -s, s),
        conv_w=jax.random.uniform(ks[4], (1, HIDDEN + 1, 1, 1), jnp.float32,
                                  -0.2, 0.2),
        conv_b=jax.random.uniform(ks[5], (1,), jnp.float32, -0.2, 0.2),
    )


def reference(obs, prev_pv, params):
    """Plain-JAX replica of the PyTorch forward pass (for verification)."""
    B, F, A, W = obs.shape
    x = jnp.transpose(obs, (0, 3, 1, 2))          # [B, W, F, A]
    wih_t = params["w_ih"].T
    whh_t = params["w_hh"].T
    bias = params["b_ih"] + params["b_hh"]
    conv_w = params["conv_w"].reshape(-1)
    scores = []
    for a in range(A):
        h = jnp.zeros((B, HIDDEN), jnp.float32)
        xa = x[:, :, :, a]                        # [B, W, F]
        for t in range(W):
            h = jnp.tanh(jnp.dot(xa[:, t], wih_t, precision="highest")
                         + jnp.dot(h, whh_t, precision="highest") + bias)
        s = (jnp.dot(h, conv_w[:HIDDEN], precision="highest")
             + prev_pv[:, a] * conv_w[HIDDEN] + params["conv_b"][0])
        scores.append(s)
    scores = jnp.stack(scores, axis=1)            # [B, A]
    logits = jnp.concatenate([jnp.zeros((B, 1), jnp.float32), scores], axis=1)
    return jax.nn.softmax(logits, axis=1)


if __name__ == "__main__":
    B, A, W = 2, 4, 8                              # batch, num_assets, window
    key = jax.random.PRNGKey(0)
    k_obs, k_pv, k_par = jax.random.split(key, 3)

    obs = jax.random.normal(k_obs, (B, FEATURES, A, W), jnp.float32)
    prev_pv = jax.nn.softmax(jax.random.normal(k_pv, (B, A), jnp.float32), axis=1)
    params = init_params(k_par)

    packed = pack_params(params, B, A)             # once per parameter set
    fwd = jax.jit(decision_network_rnn)

    new_pv = jax.block_until_ready(fwd(obs, prev_pv, packed))

    ref = reference(obs, prev_pv, params)
    assert new_pv.shape == (B, A + 1)
    assert jnp.allclose(new_pv, ref, rtol=2e-3, atol=2e-3), (new_pv, ref)
    assert jnp.allclose(jnp.sum(new_pv, axis=1), 1.0, atol=1e-3)

    print("KERNEL_OK")
</pallas_src>

<mosaic_0001>
module attributes {stable_mosaic.version = 11 : i64} {
  func.func @_decision_rnn_kernel(%arg0: memref<64x3xf32, #tpu.memory_space<vmem>>, %arg1: memref<2x4xf32, #tpu.memory_space<vmem>>, %arg2: memref<3x20xf32, #tpu.memory_space<vmem>>, %arg3: memref<20x20xf32, #tpu.memory_space<vmem>>, %arg4: memref<1x20xf32, #tpu.memory_space<vmem>>, %arg5: memref<20x1xf32, #tpu.memory_space<vmem>>, %arg6: memref<8x5xf32, #tpu.memory_space<vmem>>, %arg7: memref<2x8xf32, #tpu.memory_space<vmem>>, %arg8: memref<4x5xf32, #tpu.memory_space<vmem>>, %arg9: memref<1x5xf32, #tpu.memory_space<vmem>>, %arg10: memref<2x5xf32, #tpu.memory_space<vmem>>) attributes {dimension_semantics = [], scalar_prefetch = 0 : i64, scratch_operands = 0 : i64, tpu.core_type = #tpu.core_type<tc>} {
    %c0 = arith.constant 0 : index
    %c0_0 = arith.constant 0 : index
    %0 = vector.load %arg0[%c0, %c0_0] : memref<64x3xf32, #tpu.memory_space<vmem>>, vector<64x3xf32>
    %c0_1 = arith.constant 0 : index
    %c0_2 = arith.constant 0 : index
    %1 = vector.load %arg2[%c0_1, %c0_2] : memref<3x20xf32, #tpu.memory_space<vmem>>, vector<3x20xf32>
    %cst = arith.constant dense<0.000000e+00> : vector<64x20xf32>
    %2 = tpu.matmul %0, %1, %cst {dimension_numbers = #tpu.dot_dimension_numbers<[1], [0], [0], [1], [0, 0, 1, 1], [], []>} : vector<64x3xf32>, vector<3x20xf32>, vector<64x20xf32> -> vector<64x20xf32>
    %c0_3 = arith.constant 0 : index
    %c0_4 = arith.constant 0 : index
    %3 = vector.load %arg4[%c0_3, %c0_4] : memref<1x20xf32, #tpu.memory_space<vmem>>, vector<1x20xf32>
    %4 = vector.broadcast %3 : vector<1x20xf32> to vector<64x20xf32>
    %5 = arith.addf %2, %4 : vector<64x20xf32>
    %c0_5 = arith.constant 0 : index
    %c0_6 = arith.constant 0 : index
    %6 = vector.load %arg3[%c0_5, %c0_6] : memref<20x20xf32, #tpu.memory_space<vmem>>, vector<20x20xf32>
    %cst_7 = arith.constant 0.000000e+00 : f32
    %7 = vector.broadcast %cst_7 : f32 to vector<8x20xf32>
    %8 = vector.extract_strided_slice %5 {offsets = [0, 0], sizes = [8, 20], strides = [1, 1]} : vector<64x20xf32> to vector<8x20xf32>
    %cst_8 = arith.constant dense<0.000000e+00> : vector<8x20xf32>
    %9 = tpu.matmul %7, %6, %cst_8 {dimension_numbers = #tpu.dot_dimension_numbers<[1], [0], [0], [1], [0, 0, 1, 1], [], []>} : vector<8x20xf32>, vector<20x20xf32>, vector<8x20xf32> -> vector<8x20xf32>
    %10 = arith.addf %8, %9 : vector<8x20xf32>
    %11 = math.tanh %10 : vector<8x20xf32>
    %12 = vector.extract_strided_slice %5 {offsets = [8, 0], sizes = [8, 20], strides = [1, 1]} : vector<64x20xf32> to vector<8x20xf32>
    %cst_9 = arith.constant dense<0.000000e+00> : vector<8x20xf32>
    %13 = tpu.matmul %11, %6, %cst_9 {dimension_numbers = #tpu.dot_dimension_numbers<[1], [0], [0], [1], [0, 0, 1, 1], [], []>} : vector<8x20xf32>, vector<20x20xf32>, vector<8x20xf32> -> vector<8x20xf32>
    %14 = arith.addf %12, %13 : vector<8x20xf32>
    %15 = math.tanh %14 : vector<8x20xf32>
    %16 = vector.extract_strided_slice %5 {offsets = [16, 0], sizes = [8, 20], strides = [1, 1]} : vector<64x20xf32> to vector<8x20xf32>
    %cst_10 = arith.constant dense<0.000000e+00> : vector<8x20xf32>
    %17 = tpu.matmul %15, %6, %cst_10 {dimension_numbers = #tpu.dot_dimension_numbers<[1], [0], [0], [1], [0, 0, 1, 1], [], []>} : vector<8x20xf32>, vector<20x20xf32>, vector<8x20xf32> -> vector<8x20xf32>
    %18 = arith.addf %16, %17 : vector<8x20xf32>
    %19 = math.tanh %18 : vector<8x20xf32>
    %20 = vector.extract_strided_slice %5 {offsets = [24, 0], sizes = [8, 20], strides = [1, 1]} : vector<64x20xf32> to vector<8x20xf32>
    %cst_11 = arith.constant dense<0.000000e+00> : vector<8x20xf32>
    %21 = tpu.matmul %19, %6, %cst_11 {dimension_numbers = #tpu.dot_dimension_numbers<[1], [0], [0], [1], [0, 0, 1, 1], [], []>} : vector<8x20xf32>, vector<20x20xf32>, vector<8x20xf32> -> vector<8x20xf32>
    %22 = arith.addf %20, %21 : vector<8x20xf32>
    %23 = math.tanh %22 : vector<8x20xf32>
    %24 = vector.extract_strided_slice %5 {offsets = [32, 0], sizes = [8, 20], strides = [1, 1]} : vector<64x20xf32> to vector<8x20xf32>
    %cst_12 = arith.constant dense<0.000000e+00> : vector<8x20xf32>
    %25 = tpu.matmul %23, %6, %cst_12 {dimension_numbers = #tpu.dot_dimension_numbers<[1], [0], [0], [1], [0, 0, 1, 1], [], []>} : vector<8x20xf32>, vector<20x20xf32>, vector<8x20xf32> -> vector<8x20xf32>
    %26 = arith.addf %24, %25 : vector<8x20xf32>
    %27 = math.tanh %26 : vector<8x20xf32>
    %28 = vector.extract_strided_slice %5 {offsets = [40, 0], sizes = [8, 20], strides = [1, 1]} : vector<64x20xf32> to vector<8x20xf32>
    %cst_13 = arith.constant dense<0.000000e+00> : vector<8x20xf32>
    %29 = tpu.matmul %27, %6, %cst_13 {dimension_numbers = #tpu.dot_dimension_numbers<[1], [0], [0], [1], [0, 0, 1, 1], [], []>} : vector<8x20xf32>, vector<20x20xf32>, vector<8x20xf32> -> vector<8x20xf32>
    %30 = arith.addf %28, %29 : vector<8x20xf32>
    %31 = math.tanh %30 : vector<8x20xf32>
    %32 = vector.extract_strided_slice %5 {offsets = [48, 0], sizes = [8, 20], strides = [1, 1]} : vector<64x20xf32> to vector<8x20xf32>
    %cst_14 = arith.constant dense<0.000000e+00> : vector<8x20xf32>
    %33 = tpu.matmul %31, %6, %cst_14 {dimension_numbers = #tpu.dot_dimension_numbers<[1], [0], [0], [1], [0, 0, 1, 1], [], []>} : vector<8x20xf32>, vector<20x20xf32>, vector<8x20xf32> -> vector<8x20xf32>
    %34 = arith.addf %32, %33 : vector<8x20xf32>
    %35 = math.tanh %34 : vector<8x20xf32>
    %36 = vector.extract_strided_slice %5 {offsets = [56, 0], sizes = [8, 20], strides = [1, 1]} : vector<64x20xf32> to vector<8x20xf32>
    %cst_15 = arith.constant dense<0.000000e+00> : vector<8x20xf32>
    %37 = tpu.matmul %35, %6, %cst_15 {dimension_numbers = #tpu.dot_dimension_numbers<[1], [0], [0], [1], [0, 0, 1, 1], [], []>} : vector<8x20xf32>, vector<20x20xf32>, vector<8x20xf32> -> vector<8x20xf32>
    %38 = arith.addf %36, %37 : vector<8x20xf32>
    %39 = math.tanh %38 : vector<8x20xf32>
    %c0_16 = arith.constant 0 : index
    %c0_17 = arith.constant 0 : index
    %40 = vector.load %arg5[%c0_16, %c0_17] : memref<20x1xf32, #tpu.memory_space<vmem>>, vector<20x1xf32>
    %cst_18 = arith.constant dense<0.000000e+00> : vector<8x1xf32>
    %41 = tpu.matmul %39, %40, %cst_18 {dimension_numbers = #tpu.dot_dimension_numbers<[1], [0], [0], [1], [0, 0, 1, 1], [], []>} : vector<8x20xf32>, vector<20x1xf32>, vector<8x1xf32> -> vector<8x1xf32>
    %c0_19 = arith.constant 0 : index
    %c0_20 = arith.constant 0 : index
    %42 = vector.load %arg7[%c0_19, %c0_20] : memref<2x8xf32, #tpu.memory_space<vmem>>, vector<2x8xf32>
    %c0_21 = arith.constant 0 : index
    %c0_22 = arith.constant 0 : index
    %43 = vector.load %arg6[%c0_21, %c0_22] : memref<8x5xf32, #tpu.memory_space<vmem>>, vector<8x5xf32>
    %44 = vector.broadcast %41 : vector<8x1xf32> to vector<8x5xf32>
    %45 = arith.mulf %44, %43 : vector<8x5xf32>
    %cst_23 = arith.constant dense<0.000000e+00> : vector<2x5xf32>
    %46 = tpu.matmul %42, %45, %cst_23 {dimension_numbers = #tpu.dot_dimension_numbers<[1], [0], [0], [1], [0, 0, 1, 1], [], []>} : vector<2x8xf32>, vector<8x5xf32>, vector<2x5xf32> -> vector<2x5xf32>
    %c0_24 = arith.constant 0 : index
    %c0_25 = arith.constant 0 : index
    %47 = vector.load %arg1[%c0_24, %c0_25] : memref<2x4xf32, #tpu.memory_space<vmem>>, vector<2x4xf32>
    %c0_26 = arith.constant 0 : index
    %c0_27 = arith.constant 0 : index
    %48 = vector.load %arg8[%c0_26, %c0_27] : memref<4x5xf32, #tpu.memory_space<vmem>>, vector<4x5xf32>
    %cst_28 = arith.constant dense<0.000000e+00> : vector<2x5xf32>
    %49 = tpu.matmul %47, %48, %cst_28 {dimension_numbers = #tpu.dot_dimension_numbers<[1], [0], [0], [1], [0, 0, 1, 1], [], []>} : vector<2x4xf32>, vector<4x5xf32>, vector<2x5xf32> -> vector<2x5xf32>
    %50 = arith.addf %46, %49 : vector<2x5xf32>
    %c0_29 = arith.constant 0 : index
    %c0_30 = arith.constant 0 : index
    %51 = vector.load %arg9[%c0_29, %c0_30] : memref<1x5xf32, #tpu.memory_space<vmem>>, vector<1x5xf32>
    %52 = vector.broadcast %51 : vector<1x5xf32> to vector<2x5xf32>
    %53 = arith.addf %50, %52 : vector<2x5xf32>
    %cst_31 = arith.constant dense<0xFF800000> : vector<2xf32>
    %54 = vector.multi_reduction <maximumf>, %53, %cst_31 [1] : vector<2x5xf32> to vector<2xf32>
    %55 = vector.shape_cast %54 : vector<2xf32> to vector<2x1xf32>
    %56 = vector.broadcast %55 : vector<2x1xf32> to vector<2x5xf32>
    %57 = arith.subf %53, %56 : vector<2x5xf32>
    %58 = math.exp %57 : vector<2x5xf32>
    %cst_32 = arith.constant dense<0.000000e+00> : vector<2xf32>
    %59 = vector.multi_reduction <add>, %58, %cst_32 [1] : vector<2x5xf32> to vector<2xf32>
    %60 = vector.shape_cast %59 : vector<2xf32> to vector<2x1xf32>
    %61 = vector.broadcast %60 : vector<2x1xf32> to vector<2x5xf32>
    %62 = arith.divf %58, %61 : vector<2x5xf32>
    %c0_33 = arith.constant 0 : index
    %c0_34 = arith.constant 0 : index
    %63 = vector.load %arg10[%c0_33, %c0_34] : memref<2x5xf32, #tpu.memory_space<vmem>>, vector<2x5xf32>
    tpu.vector_store %arg10[%c0_33, %c0_34], %62 {strides = array<i32>} : memref<2x5xf32, #tpu.memory_space<vmem>>, vector<2x5xf32>,
    return
  }
}

</mosaic_0001>

<llo_original>
// kernel: decision_network_rnn.1
$region0: #{decision_network_rnn.1}
  #allocation0 [shape = 'u32[]', space=smem, size = 0x4, offset = 0x4, fixed_abs, tag = 'smem constant byte address 0x4 - core index']
  #allocation1 [shape = 'u32[144,128]{1,0:T(1,128)}', space=vmem, size = 0x12000, scoped, tag = 'internal scratch']
  %s0 = inlined_call_operand.vmem [shape: f32[64,3], index: 0, kind: input, shape index: {}]
  %s1 = inlined_call_operand.vmem [shape: f32[2,4], index: 1, kind: input, shape index: {}]
  %s2 = inlined_call_operand.vmem [shape: f32[3,20], index: 2, kind: input, shape index: {}]
  %s3 = inlined_call_operand.vmem [shape: f32[20,20], index: 3, kind: input, shape index: {}]
  %s4 = inlined_call_operand.vmem [shape: f32[1,20], index: 4, kind: input, shape index: {}]
  %s5 = inlined_call_operand.vmem [shape: f32[20,1], index: 5, kind: input, shape index: {}]
  %s6 = inlined_call_operand.vmem [shape: f32[8,5], index: 6, kind: input, shape index: {}]
  %s7 = inlined_call_operand.vmem [shape: f32[2,8], index: 7, kind: input, shape index: {}]
  %s8 = inlined_call_operand.vmem [shape: f32[4,5], index: 8, kind: input, shape index: {}]
  %s9 = inlined_call_operand.vmem [shape: f32[1,5], index: 9, kind: input, shape index: {}]
  %s10 = inlined_call_operand.hbm [shape: f32[2,5], index: 10, kind: output, shape index: {}]
  %s11 = sld [smem:[#allocation0]]
  $region50: #{decision_network_rnn.1} parent=0
    _
  %s13 = ssub.s32 1, %s11
  %s14 = scalar_select 0, %s13, %s11
  $region1: #{decision_network_rnn.1} parent=0
    #allocation2 [shape = 'u8[1024]{0}', space=vmem, size = 0x400, scoped, tag = 'output window, operand 0, single buffered']
    #allocation3 [shape = 's32[1]{0}', space=sflag, size = 0x4, scoped, tag = 'scoped memory for decision_network_rnn.1']
    %15 = vsyncpa [#allocation3], 0
    // Predicated region
    $region2: #{decision_network_rnn.1} parent=1 // pred_check
      _
    $region3: #{decision_network_rnn.1} parent=1 // pred_check_branch
      %17 = sbr.rel (0) target = $region5
    $region4: #{decision_network_rnn.1} parent=1 // pred_region
      _
    $region5: #{decision_network_rnn.1} parent=1 // pred_fallthru
      _
    // Predicated region
    $region6: #{decision_network_rnn.1} parent=1 // pred_check
      _
    $region7: #{decision_network_rnn.1} parent=1 // pred_check_branch
      %19 = sbr.rel (0) target = $region9
    $region8: #{decision_network_rnn.1} parent=1 // pred_region
      _
    $region9: #{decision_network_rnn.1} parent=1 // pred_fallthru
      _
    // Predicated region
    $region10: #{decision_network_rnn.1} parent=1 // pred_check
      _
    $region11: #{decision_network_rnn.1} parent=1 // pred_check_branch
      %21 = sbr.rel (0) target = $region13
    $region12: #{decision_network_rnn.1} parent=1 // pred_region
      _
    $region13: #{decision_network_rnn.1} parent=1 // pred_fallthru
      _
    // Predicated region
    $region14: #{decision_network_rnn.1} parent=1 // pred_check
      _
    $region15: #{decision_network_rnn.1} parent=1 // pred_check_branch
      %23 = sbr.rel (0) target = $region17
    $region16: #{decision_network_rnn.1} parent=1 // pred_region
      _
    $region17: #{decision_network_rnn.1} parent=1 // pred_fallthru
      _
    // Predicated region
    $region18: #{decision_network_rnn.1} parent=1 // pred_check
      _
    $region19: #{decision_network_rnn.1} parent=1 // pred_check_branch
      %25 = sbr.rel (0) target = $region21
    $region20: #{decision_network_rnn.1} parent=1 // pred_region
      _
    $region21: #{decision_network_rnn.1} parent=1 // pred_fallthru
      _
    // Predicated region
    $region22: #{decision_network_rnn.1} parent=1 // pred_check
      _
    $region23: #{decision_network_rnn.1} parent=1 // pred_check_branch
      %27 = sbr.rel (0) target = $region25
    $region24: #{decision_network_rnn.1} parent=1 // pred_region
      _
    $region25: #{decision_network_rnn.1} parent=1 // pred_fallthru
      _
    // Predicated region
    $region26: #{decision_network_rnn.1} parent=1 // pred_check
      _
    $region27: #{decision_network_rnn.1} parent=1 // pred_check_branch
      %29 = sbr.rel (0) target = $region29
    $region28: #{decision_network_rnn.1} parent=1 // pred_region
      _
    $region29: #{decision_network_rnn.1} parent=1 // pred_fallthru
      _
    // Predicated region
    $region30: #{decision_network_rnn.1} parent=1 // pred_check
      _
    $region31: #{decision_network_rnn.1} parent=1 // pred_check_branch
      %31 = sbr.rel (0) target = $region33
    $region32: #{decision_network_rnn.1} parent=1 // pred_region
      _
    $region33: #{decision_network_rnn.1} parent=1 // pred_fallthru
      _
    // Predicated region
    $region34: #{decision_network_rnn.1} parent=1 // pred_check
      _
    $region35: #{decision_network_rnn.1} parent=1 // pred_check_branch
      %33 = sbr.rel (0) target = $region37
    $region36: #{decision_network_rnn.1} parent=1 // pred_region
      _
    $region37: #{decision_network_rnn.1} parent=1 // pred_fallthru
      _
    // Predicated region
    $region38: #{decision_network_rnn.1} parent=1 // pred_check
      _
    $region39: #{decision_network_rnn.1} parent=1 // pred_check_branch
      %35 = sbr.rel (0) target = $region41
    $region40: #{decision_network_rnn.1} parent=1 // pred_region
      _
    $region41: #{decision_network_rnn.1} parent=1 // pred_fallthru
      _
    %v36 = vld [vmem:[%s0] sm:$0xff]
    %v37 = vld [vmem:[%s0 + $0x8] sm:$0xff]
    %v38 = vld [vmem:[%s0 + $0x10] sm:$0xff]
    %v39 = vld [vmem:[%s0 + $0x18] sm:$0xff]
    %v40 = vld [vmem:[%s0 + $0x20] sm:$0xff]
    %v41 = vld [vmem:[%s0 + $0x28] sm:$0xff]
    %v42 = vld [vmem:[%s0 + $0x30] sm:$0xff]
    %v43 = vld [vmem:[%s0 + $0x38] sm:$0xff]
    %v44 = vld [vmem:[%s2] sm:$0x7]
    %v45 = vld [vmem:[%s4] sm:$0x1]
    %v47 = vlaneseq
    %v48 = vshrl.u32 %v47, 7
    %v49 = vsub.s32 0, %v48
    %v50 = vrot.slane %v45, %v49
    %vm52 = vcmask 23552
    %v54 = vsel %vm52, %v36, 0
    %v57 = vsel %vm52, %v37, 0
    %v60 = vsel %vm52, %v38, 0
    %v63 = vsel %vm52, %v39, 0
    %v66 = vsel %vm52, %v40, 0
    %v69 = vsel %vm52, %v41, 0
    %v72 = vsel %vm52, %v42, 0
    %v75 = vsel %vm52, %v43, 0
    %vm77 = vcmask 1042432
    %v79 = vsel %vm77, %v44, 0
    %81 = vmatprep.subr.mxu0 0.0
    %82 = vmatpush1.msra.mxu0 %v79
    %83 = vmatprep.subr.mxu0 0.0
    %84 = vmatpush1.msra.mxu0 0.0
    %85 = vmatprep.subr.mxu0 0.0
    %86 = vmatpush1.msra.mxu0 0.0
    %87 = vmatprep.subr.mxu0 0.0
    %88 = vmatpush1.msra.mxu0 0.0
    %89 = vmatprep.subr.mxu0 0.0
    %90 = vmatpush1.msra.mxu0 0.0
    %91 = vmatprep.subr.mxu0 0.0
    %92 = vmatpush1.msra.mxu0 0.0
    %93 = vmatprep.subr.mxu0 0.0
    %94 = vmatpush1.msra.mxu0 0.0
    %95 = vmatprep.subr.mxu0 0.0
    %96 = vmatpush1.msra.mxu0 0.0
    %97 = vmatprep.subr.mxu0 0.0
    %98 = vmatpush1.msra.mxu0 0.0
    %99 = vmatprep.subr.mxu0 0.0
    %100 = vmatpush1.msra.mxu0 0.0
    %101 = vmatprep.subr.mxu0 0.0
    %102 = vmatpush1.msra.mxu0 0.0
    %103 = vmatprep.subr.mxu0 0.0
    %104 = vmatpush1.msra.mxu0 0.0
    %105 = vmatprep.subr.mxu0 0.0
    %106 = vmatpush1.msra.mxu0 0.0
    %107 = vmatprep.subr.mxu0 0.0
    %108 = vmatpush1.msra.mxu0 0.0
    %109 = vmatprep.subr.mxu0 0.0
    %110 = vmatpush1.msra.mxu0 0.0
    %111 = vmatprep.subr.mxu0 0.0
    %112 = vmatpush1.msra.mxu0 0.0
    %113 = vmatprep.subr.mxu0 0.0
    %114 = vmatpush1.msra.mxu0 0.0
    %115 = vmatprep.subr.mxu0 0.0
    %116 = vmatpush1.msra.mxu0 0.0
    %117 = vmatprep.subr.mxu0 0.0
    %118 = vmatpush1.msra.mxu0 0.0
    %119 = vmatprep.subr.mxu0 0.0
    %120 = vmatpush1.msra.mxu0 0.0
    %121 = vmatprep.subr.mxu0 0.0
    %122 = vmatpush1.msra.mxu0 0.0
    %123 = vmatprep.subr.mxu0 0.0
    %124 = vmatpush1.msra.mxu0 0.0
    %125 = vmatprep.subr.mxu0 0.0
    %126 = vmatpush1.msra.mxu0 0.0
    %127 = vmatprep.subr.mxu0 0.0
    %128 = vmatpush1.msra.mxu0 0.0
    %129 = vmatprep.subr.mxu0 0.0
    %130 = vmatpush1.msra.mxu0 0.0
    %131 = vmatprep.subr.mxu0 0.0
    %132 = vmatpush1.msra.mxu0 0.0
    %133 = vmatprep.subr.mxu0 0.0
    %134 = vmatpush1.msra.mxu0 0.0
    %135 = vmatprep.subr.mxu0 0.0
    %136 = vmatpush1.msra.mxu0 0.0
    %137 = vmatprep.subr.mxu0 0.0
    %138 = vmatpush1.msra.mxu0 0.0
    %139 = vmatprep.subr.mxu0 0.0
    %140 = vmatpush1.msra.mxu0 0.0
    %141 = vmatprep.subr.mxu0 0.0
    %142 = vmatpush1.msra.mxu0 0.0
    %143 = vmatprep.subr.mxu0 0.0
    %144 = vmatpush1.msra.mxu0 0.0
    %145 = vmatprep.mubr.f32.mxu0 0.0
    %146 = vmatmul.mubr.f32.gmra.mrb[0].mxu0 %v54
    %v147 = vpop.f32.mrb[0].mxu0
    %v148 = vadd.f32 %v50, %v147
    %v149 = vpop.f32.mrb[0].mxu0
    %150 = vmatprep.mubr.f32.mxu0 0.0
    %151 = vmatmul.mubr.f32.gmra.mrb[0].mxu0 %v57
    %v152 = vpop.f32.mrb[0].mxu0
    %v153 = vadd.f32 %v50, %v152
    %v154 = vpop.f32.mrb[0].mxu0
    %155 = vmatprep.mubr.f32.mxu0 0.0
    %156 = vmatmul.mubr.f32.gmra.mrb[0].mxu0 %v60
    %v157 = vpop.f32.mrb[0].mxu0
    %v158 = vadd.f32 %v50, %v157
    %v159 = vpop.f32.mrb[0].mxu0
    %160 = vmatprep.mubr.f32.mxu0 0.0
    %161 = vmatmul.mubr.f32.gmra.mrb[0].mxu0 %v63
    %v162 = vpop.f32.mrb[0].mxu0
    %v163 = vadd.f32 %v50, %v162
    %v164 = vpop.f32.mrb[0].mxu0
    %165 = vmatprep.mubr.f32.mxu0 0.0
    %166 = vmatmul.mubr.f32.gmra.mrb[0].mxu0 %v66
    %v167 = vpop.f32.mrb[0].mxu0
    %v168 = vadd.f32 %v50, %v167
    %v169 = vpop.f32.mrb[0].mxu0
    %170 = vmatprep.mubr.f32.mxu0 0.0
    %171 = vmatmul.mubr.f32.gmra.mrb[0].mxu0 %v69
    %v172 = vpop.f32.mrb[0].mxu0
    %v173 = vadd.f32 %v50, %v172
    %v174 = vpop.f32.mrb[0].mxu0
    %175 = vmatprep.mubr.f32.mxu0 0.0
    %176 = vmatmul.mubr.f32.gmra.mrb[0].mxu0 %v72
    %v177 = vpop.f32.mrb[0].mxu0
    %v178 = vadd.f32 %v50, %v177
    %v179 = vpop.f32.mrb[0].mxu0
    %180 = vmatprep.mubr.f32.mxu0 0.0
    %181 = vmatmul.mubr.f32.gmra.mrb[0].mxu0 %v75
    %v182 = vpop.f32.mrb[0].mxu0
    %v183 = vadd.f32 %v50, %v182
    %v184 = vpop.f32.mrb[0].mxu0
    %185 = vdwg.mxu0
    %v186 = vld [vmem:[%s3] sm:$0xff]
    %v187 = vld [vmem:[%s3 + $0x8] sm:$0xff]
    %v188 = vld [vmem:[%s3 + $0x10] sm:$0xf]
    %vm189 = vcmask 162816
    %v191 = vsel %vm189, 0.0, 0
    %vm193 = vcmask 1043456
    %v195 = vsel %vm193, %v188, 0
    %197 = vmatprep.subr.mxu0 0.0
    %198 = vmatpush1.msra.mxu0 %v186
    %199 = vmatprep.subr.mxu0 0.0
    %200 = vmatpush1.msra.mxu0 %v187
    %201 = vmatprep.subr.mxu0 0.0
    %202 = vmatpush1.msra.mxu0 %v195
    %203 = vmatprep.subr.mxu0 0.0
    %204 = vmatpush1.msra.mxu0 0.0
    %205 = vmatprep.subr.mxu0 0.0
    %206 = vmatpush1.msra.mxu0 0.0
    %207 = vmatprep.subr.mxu0 0.0
    %208 = vmatpush1.msra.mxu0 0.0
    %209 = vmatprep.subr.mxu0 0.0
    %210 = vmatpush1.msra.mxu0 0.0
    %211 = vmatprep.subr.mxu0 0.0
    %212 = vmatpush1.msra.mxu0 0.0
    %213 = vmatprep.subr.mxu0 0.0
    %214 = vmatpush1.msra.mxu0 0.0
    %215 = vmatprep.subr.mxu0 0.0
    %216 = vmatpush1.msra.mxu0 0.0
    %217 = vmatprep.subr.mxu0 0.0
    %218 = vmatpush1.msra.mxu0 0.0
    %219 = vmatprep.subr.mxu0 0.0
    %220 = vmatpush1.msra.mxu0 0.0
    %221 = vmatprep.subr.mxu0 0.0
    %222 = vmatpush1.msra.mxu0 0.0
    %223 = vmatprep.subr.mxu0 0.0
    %224 = vmatpush1.msra.mxu0 0.0
    %225 = vmatprep.subr.mxu0 0.0
    %226 = vmatpush1.msra.mxu0 0.0
    %227 = vmatprep.subr.mxu0 0.0
    %228 = vmatpush1.msra.mxu0 0.0
    %229 = vmatprep.subr.mxu0 0.0
    %230 = vmatpush1.msra.mxu0 0.0
    %231 = vmatprep.subr.mxu0 0.0
    %232 = vmatpush1.msra.mxu0 0.0
    %233 = vmatprep.subr.mxu0 0.0
    %234 = vmatpush1.msra.mxu0 0.0
    %235 = vmatprep.subr.mxu0 0.0
    %236 = vmatpush1.msra.mxu0 0.0
    %237 = vmatprep.subr.mxu0 0.0
    %238 = vmatpush1.msra.mxu0 0.0
    %239 = vmatprep.subr.mxu0 0.0
    %240 = vmatpush1.msra.mxu0 0.0
    %241 = vmatprep.subr.mxu0 0.0
    %242 = vmatpush1.msra.mxu0 0.0
    %243 = vmatprep.subr.mxu0 0.0
    %244 = vmatpush1.msra.mxu0 0.0
    %245 = vmatprep.subr.mxu0 0.0
    %246 = vmatpush1.msra.mxu0 0.0
    %247 = vmatprep.subr.mxu0 0.0
    %248 = vmatpush1.msra.mxu0 0.0
    %249 = vmatprep.subr.mxu0 0.0
    %250 = vmatpush1.msra.mxu0 0.0
    %251 = vmatprep.subr.mxu0 0.0
    %252 = vmatpush1.msra.mxu0 0.0
    %253 = vmatprep.subr.mxu0 0.0
    %254 = vmatpush1.msra.mxu0 0.0
    %255 = vmatprep.subr.mxu0 0.0
    %256 = vmatpush1.msra.mxu0 0.0
    %257 = vmatprep.subr.mxu0 0.0
    %258 = vmatpush1.msra.mxu0 0.0
    %259 = vmatprep.subr.mxu0 0.0
    %260 = vmatpush1.msra.mxu0 0.0
    %261 = vmatprep.mubr.f32.mxu0 0.0
    %262 = vmatmul.mubr.f32.gmra.mrb[0].mxu0 %v191
    %v263 = vpop.f32.mrb[0].mxu0
    %v264 = vadd.f32 0.0, %v263
    %v265 = vpop.f32.mrb[0].mxu0
    %266 = vdwg.mxu0
    %v267 = vadd.f32 %v148, %v264
    %v268 = vtanh.pop %v267
    %v270 = vsel %vm189, %v268, 0
    %272 = vmatprep.subr.mxu0 0.0
    %273 = vmatpush1.msra.mxu0 %v186
    %274 = vmatprep.subr.mxu0 0.0
    %275 = vmatpush1.msra.mxu0 %v187
    %276 = vmatprep.subr.mxu0 0.0
    %277 = vmatpush1.msra.mxu0 %v195
    %278 = vmatprep.subr.mxu0 0.0
    %279 = vmatpush1.msra.mxu0 0.0
    %280 = vmatprep.subr.mxu0 0.0
    %281 = vmatpush1.msra.mxu0 0.0
    %282 = vmatprep.subr.mxu0 0.0
    %283 = vmatpush1.msra.mxu0 0.0
    %284 = vmatprep.subr.mxu0 0.0
    %285 = vmatpush1.msra.mxu0 0.0
    %286 = vmatprep.subr.mxu0 0.0
    %287 = vmatpush1.msra.mxu0 0.0
    %288 = vmatprep.subr.mxu0 0.0
    %289 = vmatpush1.msra.mxu0 0.0
    %290 = vmatprep.subr.mxu0 0.0
    %291 = vmatpush1.msra.mxu0 0.0
    %292 = vmatprep.subr.mxu0 0.0
    %293 = vmatpush1.msra.mxu0 0.0
    %294 = vmatprep.subr.mxu0 0.0
    %295 = vmatpush1.msra.mxu0 0.0
    %296 = vmatprep.subr.mxu0 0.0
    %297 = vmatpush1.msra.mxu0 0.0
    %298 = vmatprep.subr.mxu0 0.0
    %299 = vmatpush1.msra.mxu0 0.0
    %300 = vmatprep.subr.mxu0 0.0
    %301 = vmatpush1.msra.mxu0 0.0
    %302 = vmatprep.subr.mxu0 0.0
    %303 = vmatpush1.msra.mxu0 0.0
    %304 = vmatprep.subr.mxu0 0.0
    %305 = vmatpush1.msra.mxu0 0.0
    %306 = vmatprep.subr.mxu0 0.0
    %307 = vmatpush1.msra.mxu0 0.0
    %308 = vmatprep.subr.mxu0 0.0
    %309 = vmatpush1.msra.mxu0 0.0
    %310 = vmatprep.subr.mxu0 0.0
    %311 = vmatpush1.msra.mxu0 0.0
    %312 = vmatprep.subr.mxu0 0.0
    %313 = vmatpush1.msra.mxu0 0.0
    %314 = vmatprep.subr.mxu0 0.0
    %315 = vmatpush1.msra.mxu0 0.0
    %316 = vmatprep.subr.mxu0 0.0
    %317 = vmatpush1.msra.mxu0 0.0
    %318 = vmatprep.subr.mxu0 0.0
    %319 = vmatpush1.msra.mxu0 0.0
    %320 = vmatprep.subr.mxu0 0.0
    %321 = vmatpush1.msra.mxu0 0.0
    %322 = vmatprep.subr.mxu0 0.0
    %323 = vmatpush1.msra.mxu0 0.0
    %324 = vmatprep.subr.mxu0 0.0
    %325 = vmatpush1.msra.mxu0 0.0
    %326 = vmatprep.subr.mxu0 0.0
    %327 = vmatpush1.msra.mxu0 0.0
    %328 = vmatprep.subr.mxu0 0.0
    %329 = vmatpush1.msra.mxu0 0.0
    %330 = vmatprep.subr.mxu0 0.0
    %331 = vmatpush1.msra.mxu0 0.0
    %332 = vmatprep.subr.mxu0 0.0
    %333 = vmatpush1.msra.mxu0 0.0
    %334 = vmatprep.subr.mxu0 0.0
    %335 = vmatpush1.msra.mxu0 0.0
    %336 = vmatprep.mubr.f32.mxu0 0.0
    %337 = vmatmul.mubr.f32.gmra.mrb[0].mxu0 %v270
    %v338 = vpop.f32.mrb[0].mxu0
    %v339 = vadd.f32 0.0, %v338
    %v340 = vpop.f32.mrb[0].mxu0
    %341 = vdwg.mxu0
    %v342 = vadd.f32 %v153, %v339
    %v343 = vtanh.pop %v342
    %v345 = vsel %vm189, %v343, 0
    %347 = vmatprep.subr.mxu0 0.0
    %348 = vmatpush1.msra.mxu0 %v186
    %349 = vmatprep.subr.mxu0 0.0
    %350 = vmatpush1.msra.mxu0 %v187
    %351 = vmatprep.subr.mxu0 0.0
    %352 = vmatpush1.msra.mxu0 %v195
    %353 = vmatprep.subr.mxu0 0.0
    %354 = vmatpush1.msra.mxu0 0.0
    %355 = vmatprep.subr.mxu0 0.0
    %356 = vmatpush1.msra.mxu0 0.0
    %357 = vmatprep.subr.mxu0 0.0
    %358 = vmatpush1.msra.mxu0 0.0
    %359 = vmatprep.subr.mxu0 0.0
    %360 = vmatpush1.msra.mxu0 0.0
    %361 = vmatprep.subr.mxu0 0.0
    %362 = vmatpush1.msra.mxu0 0.0
    %363 = vmatprep.subr.mxu0 0.0
    %364 = vmatpush1.msra.mxu0 0.0
    %365 = vmatprep.subr.mxu0 0.0
    %366 = vmatpush1.msra.mxu0 0.0
    %367 = vmatprep.subr.mxu0 0.0
    %368 = vmatpush1.msra.mxu0 0.0
    %369 = vmatprep.subr.mxu0 0.0
    %370 = vmatpush1.msra.mxu0 0.0
    %371 = vmatprep.subr.mxu0 0.0
    %372 = vmatpush1.msra.mxu0 0.0
    %373 = vmatprep.subr.mxu0 0.0
    %374 = vmatpush1.msra.mxu0 0.0
    %375 = vmatprep.subr.mxu0 0.0
    %376 = vmatpush1.msra.mxu0 0.0
    %377 = vmatprep.subr.mxu0 0.0
    %378 = vmatpush1.msra.mxu0 0.0
    %379 = vmatprep.subr.mxu0 0.0
    %380 = vmatpush1.msra.mxu0 0.0
    %381 = vmatprep.subr.mxu0 0.0
    %382 = vmatpush1.msra.mxu0 0.0
    %383 = vmatprep.subr.mxu0 0.0
    %384 = vmatpush1.msra.mxu0 0.0
    %385 = vmatprep.subr.mxu0 0.0
    %386 = vmatpush1.msra.mxu0 0.0
    %387 = vmatprep.subr.mxu0 0.0
    %388 = vmatpush1.msra.mxu0 0.0
    %389 = vmatprep.subr.mxu0 0.0
    %390 = vmatpush1.msra.mxu0 0.0
    %391 = vmatprep.subr.mxu0 0.0
    %392 = vmatpush1.msra.mxu0 0.0
    %393 = vmatprep.subr.mxu0 0.0
    %394 = vmatpush1.msra.mxu0 0.0
    %395 = vmatprep.subr.mxu0 0.0
    %396 = vmatpush1.msra.mxu0 0.0
    %397 = vmatprep.subr.mxu0 0.0
    %398 = vmatpush1.msra.mxu0 0.0
    %399 = vmatprep.subr.mxu0 0.0
    %400 = vmatpush1.msra.mxu0 0.0
    %401 = vmatprep.subr.mxu0 0.0
    %402 = vmatpush1.msra.mxu0 0.0
    %403 = vmatprep.subr.mxu0 0.0
    %404 = vmatpush1.msra.mxu0 0.0
    %405 = vmatprep.subr.mxu0 0.0
    %406 = vmatpush1.msra.mxu0 0.0
    %407 = vmatprep.subr.mxu0 0.0
    %408 = vmatpush1.msra.mxu0 0.0
    %409 = vmatprep.subr.mxu0 0.0
    %410 = vmatpush1.msra.mxu0 0.0
    %411 = vmatprep.mubr.f32.mxu0 0.0
    %412 = vmatmul.mubr.f32.gmra.mrb[0].mxu0 %v345
    %v413 = vpop.f32.mrb[0].mxu0
    %v414 = vadd.f32 0.0, %v413
    %v415 = vpop.f32.mrb[0].mxu0
    %416 = vdwg.mxu0
    %v417 = vadd.f32 %v158, %v414
    %v418 = vtanh.pop %v417
    %v420 = vsel %vm189, %v418, 0
    %422 = vmatprep.subr.mxu0 0.0
    %423 = vmatpush1.msra.mxu0 %v186
    %424 = vmatprep.subr.mxu0 0.0
    %425 = vmatpush1.msra.mxu0 %v187
    %426 = vmatprep.subr.mxu0 0.0
    %427 = vmatpush1.msra.mxu0 %v195
    %428 = vmatprep.subr.mxu0 0.0
    %429 = vmatpush1.msra.mxu0 0.0
    %430 = vmatprep.subr.mxu0 0.0
    %431 = vmatpush1.msra.mxu0 0.0
    %432 = vmatprep.subr.mxu0 0.0
    %433 = vmatpush1.msra.mxu0 0.0
    %434 = vmatprep.subr.mxu0 0.0
    %435 = vmatpush1.msra.mxu0 0.0
    %436 = vmatprep.subr.mxu0 0.0
    %437 = vmatpush1.msra.mxu0 0.0
    %438 = vmatprep.subr.mxu0 0.0
    %439 = vmatpush1.msra.mxu0 0.0
    %440 = vmatprep.subr.mxu0 0.0
    %441 = vmatpush1.msra.mxu0 0.0
    %442 = vmatprep.subr.mxu0 0.0
    %443 = vmatpush1.msra.mxu0 0.0
    %444 = vmatprep.subr.mxu0 0.0
    %445 = vmatpush1.msra.mxu0 0.0
    %446 = vmatprep.subr.mxu0 0.0
    %447 = vmatpush1.msra.mxu0 0.0
    %448 = vmatprep.subr.mxu0 0.0
    %449 = vmatpush1.msra.mxu0 0.0
    %450 = vmatprep.subr.mxu0 0.0
    %451 = vmatpush1.msra.mxu0 0.0
    %452 = vmatprep.subr.mxu0 0.0
    %453 = vmatpush1.msra.mxu0 0.0
    %454 = vmatprep.subr.mxu0 0.0
    %455 = vmatpush1.msra.mxu0 0.0
    %456 = vmatprep.subr.mxu0 0.0
    %457 = vmatpush1.msra.mxu0 0.0
    %458 = vmatprep.subr.mxu0 0.0
    %459 = vmatpush1.msra.mxu0 0.0
    %460 = vmatprep.subr.mxu0 0.0
    %461 = vmatpush1.msra.mxu0 0.0
    %462 = vmatprep.subr.mxu0 0.0
    %463 = vmatpush1.msra.mxu0 0.0
    %464 = vmatprep.subr.mxu0 0.0
    %465 = vmatpush1.msra.mxu0 0.0
    %466 = vmatprep.subr.mxu0 0.0
    %467 = vmatpush1.msra.mxu0 0.0
    %468 = vmatprep.subr.mxu0 0.0
    %469 = vmatpush1.msra.mxu0 0.0
    %470 = vmatprep.subr.mxu0 0.0
    %471 = vmatpush1.msra.mxu0 0.0
    %472 = vmatprep.subr.mxu0 0.0
    %473 = vmatpush1.msra.mxu0 0.0
    %474 = vmatprep.subr.mxu0 0.0
    %475 = vmatpush1.msra.mxu0 0.0
    %476 = vmatprep.subr.mxu0 0.0
    %477 = vmatpush1.msra.mxu0 0.0
    %478 = vmatprep.subr.mxu0 0.0
    %479 = vmatpush1.msra.mxu0 0.0
    %480 = vmatprep.subr.mxu0 0.0
    %481 = vmatpush1.msra.mxu0 0.0
    %482 = vmatprep.subr.mxu0 0.0
    %483 = vmatpush1.msra.mxu0 0.0
    %484 = vmatprep.subr.mxu0 0.0
    %485 = vmatpush1.msra.mxu0 0.0
    %486 = vmatprep.mubr.f32.mxu0 0.0
    %487 = vmatmul.mubr.f32.gmra.mrb[0].mxu0 %v420
    %v488 = vpop.f32.mrb[0].mxu0
    %v489 = vadd.f32 0.0, %v488
    %v490 = vpop.f32.mrb[0].mxu0
    %491 = vdwg.mxu0
    %v492 = vadd.f32 %v163, %v489
    %v493 = vtanh.pop %v492
    %v495 = vsel %vm189, %v493, 0
    %497 = vmatprep.subr.mxu0 0.0
    %498 = vmatpush1.msra.mxu0 %v186
    %499 = vmatprep.subr.mxu0 0.0
    %500 = vmatpush1.msra.mxu0 %v187
    %501 = vmatprep.subr.mxu0 0.0
    %502 = vmatpush1.msra.mxu0 %v195
    %503 = vmatprep.subr.mxu0 0.0
    %504 = vmatpush1.msra.mxu0 0.0
    %505 = vmatprep.subr.mxu0 0.0
    %506 = vmatpush1.msra.mxu0 0.0
    %507 = vmatprep.subr.mxu0 0.0
    %508 = vmatpush1.msra.mxu0 0.0
    %509 = vmatprep.subr.mxu0 0.0
    %510 = vmatpush1.msra.mxu0 0.0
    %511 = vmatprep.subr.mxu0 0.0
    %512 = vmatpush1.msra.mxu0 0.0
    %513 = vmatprep.subr.mxu0 0.0
    %514 = vmatpush1.msra.mxu0 0.0
    %515 = vmatprep.subr.mxu0 0.0
    %516 = vmatpush1.msra.mxu0 0.0
    %517 = vmatprep.subr.mxu0 0.0
    %518 = vmatpush1.msra.mxu0 0.0
    %519 = vmatprep.subr.mxu0 0.0
    %520 = vmatpush1.msra.mxu0 0.0
    %521 = vmatprep.subr.mxu0 0.0
    %522 = vmatpush1.msra.mxu0 0.0
    %523 = vmatprep.subr.mxu0 0.0
    %524 = vmatpush1.msra.mxu0 0.0
    %525 = vmatprep.subr.mxu0 0.0
    %526 = vmatpush1.msra.mxu0 0.0
    %527 = vmatprep.subr.mxu0 0.0
    %528 = vmatpush1.msra.mxu0 0.0
    %529 = vmatprep.subr.mxu0 0.0
    %530 = vmatpush1.msra.mxu0 0.0
    %531 = vmatprep.subr.mxu0 0.0
    %532 = vmatpush1.msra.mxu0 0.0
    %533 = vmatprep.subr.mxu0 0.0
    %534 = vmatpush1.msra.mxu0 0.0
    %535 = vmatprep.subr.mxu0 0.0
    %536 = vmatpush1.msra.mxu0 0.0
    %537 = vmatprep.subr.mxu0 0.0
    %538 = vmatpush1.msra.mxu0 0.0
    %539 = vmatprep.subr.mxu0 0.0
    %540 = vmatpush1.msra.mxu0 0.0
    %541 = vmatprep.subr.mxu0 0.0
    %542 = vmatpush1.msra.mxu0 0.0
    %543 = vmatprep.subr.mxu0 0.0
    %544 = vmatpush1.msra.mxu0 0.0
    %545 = vmatprep.subr.mxu0 0.0
    %546 = vmatpush1.msra.mxu0 0.0
    %547 = vmatprep.subr.mxu0 0.0
    %548 = vmatpush1.msra.mxu0 0.0
    %549 = vmatprep.subr.mxu0 0.0
    %550 = vmatpush1.msra.mxu0 0.0
    %551 = vmatprep.subr.mxu0 0.0
    %552 = vmatpush1.msra.mxu0 0.0
    %553 = vmatprep.subr.mxu0 0.0
    %554 = vmatpush1.msra.mxu0 0.0
    %555 = vmatprep.subr.mxu0 0.0
    %556 = vmatpush1.msra.mxu0 0.0
    %557 = vmatprep.subr.mxu0 0.0
    %558 = vmatpush1.msra.mxu0 0.0
    %559 = vmatprep.subr.mxu0 0.0
    %560 = vmatpush1.msra.mxu0 0.0
    %561 = vmatprep.mubr.f32.mxu0 0.0
    %562 = vmatmul.mubr.f32.gmra.mrb[0].mxu0 %v495
    %v563 = vpop.f32.mrb[0].mxu0
    %v564 = vadd.f32 0.0, %v563
    %v565 = vpop.f32.mrb[0].mxu0
    %566 = vdwg.mxu0
    %v567 = vadd.f32 %v168, %v564
    %v568 = vtanh.pop %v567
    %v570 = vsel %vm189, %v568, 0
    %572 = vmatprep.subr.mxu0 0.0
    %573 = vmatpush1.msra.mxu0 %v186
    %574 = vmatprep.subr.mxu0 0.0
    %575 = vmatpush1.msra.mxu0 %v187
    %576 = vmatprep.subr.mxu0 0.0
    %577 = vmatpush1.msra.mxu0 %v195
    %578 = vmatprep.subr.mxu0 0.0
    %579 = vmatpush1.msra.mxu0 0.0
    %580 = vmatprep.subr.mxu0 0.0
    %581 = vmatpush1.msra.mxu0 0.0
    %582 = vmatprep.subr.mxu0 0.0
    %583 = vmatpush1.msra.mxu0 0.0
    %584 = vmatprep.subr.mxu0 0.0
    %585 = vmatpush1.msra.mxu0 0.0
    %586 = vmatprep.subr.mxu0 0.0
    %587 = vmatpush1.msra.mxu0 0.0
    %588 = vmatprep.subr.mxu0 0.0
    %589 = vmatpush1.msra.mxu0 0.0
    %590 = vmatprep.subr.mxu0 0.0
    %591 = vmatpush1.msra.mxu0 0.0
    %592 = vmatprep.subr.mxu0 0.0
    %593 = vmatpush1.msra.mxu0 0.0
    %594 = vmatprep.subr.mxu0 0.0
    %595 = vmatpush1.msra.mxu0 0.0
    %596 = vmatprep.subr.mxu0 0.0
    %597 = vmatpush1.msra.mxu0 0.0
    %598 = vmatprep.subr.mxu0 0.0
    %599 = vmatpush1.msra.mxu0 0.0
    %600 = vmatprep.subr.mxu0 0.0
    %601 = vmatpush1.msra.mxu0 0.0
    %602 = vmatprep.subr.mxu0 0.0
    %603 = vmatpush1.msra.mxu0 0.0
    %604 = vmatprep.subr.mxu0 0.0
    %605 = vmatpush1.msra.mxu0 0.0
    %606 = vmatprep.subr.mxu0 0.0
    %607 = vmatpush1.msra.mxu0 0.0
    %608 = vmatprep.subr.mxu0 0.0
    %609 = vmatpush1.msra.mxu0 0.0
    %610 = vmatprep.subr.mxu0 0.0
    %611 = vmatpush1.msra.mxu0 0.0
    %612 = vmatprep.subr.mxu0 0.0
    %613 = vmatpush1.msra.mxu0 0.0
    %614 = vmatprep.subr.mxu0 0.0
    %615 = vmatpush1.msra.mxu0 0.0
    %616 = vmatprep.subr.mxu0 0.0
    %617 = vmatpush1.msra.mxu0 0.0
    %618 = vmatprep.subr.mxu0 0.0
    %619 = vmatpush1.msra.mxu0 0.0
    %620 = vmatprep.subr.mxu0 0.0
    %621 = vmatpush1.msra.mxu0 0.0
    %622 = vmatprep.subr.mxu0 0.0
    %623 = vmatpush1.msra.mxu0 0.0
    %624 = vmatprep.subr.mxu0 0.0
    %625 = vmatpush1.msra.mxu0 0.0
    %626 = vmatprep.subr.mxu0 0.0
    %627 = vmatpush1.msra.mxu0 0.0
    %628 = vmatprep.subr.mxu0 0.0
    %629 = vmatpush1.msra.mxu0 0.0
    %630 = vmatprep.subr.mxu0 0.0
    %631 = vmatpush1.msra.mxu0 0.0
    %632 = vmatprep.subr.mxu0 0.0
    %633 = vmatpush1.msra.mxu0 0.0
    %634 = vmatprep.subr.mxu0 0.0
    %635 = vmatpush1.msra.mxu0 0.0
    %636 = vmatprep.mubr.f32.mxu0 0.0
    %637 = vmatmul.mubr.f32.gmra.mrb[0].mxu0 %v570
    %v638 = vpop.f32.mrb[0].mxu0
    %v639 = vadd.f32 0.0, %v638
    %v640 = vpop.f32.mrb[0].mxu0
    %641 = vdwg.mxu0
    %v642 = vadd.f32 %v173, %v639
    %v643 = vtanh.pop %v642
    %v645 = vsel %vm189, %v643, 0
    %647 = vmatprep.subr.mxu0 0.0
    %648 = vmatpush1.msra.mxu0 %v186
    %649 = vmatprep.subr.mxu0 0.0
    %650 = vmatpush1.msra.mxu0 %v187
    %651 = vmatprep.subr.mxu0 0.0
    %652 = vmatpush1.msra.mxu0 %v195
    %653 = vmatprep.subr.mxu0 0.0
    %654 = vmatpush1.msra.mxu0 0.0
    %655 = vmatprep.subr.mxu0 0.0
    %656 = vmatpush1.msra.mxu0 0.0
    %657 = vmatprep.subr.mxu0 0.0
    %658 = vmatpush1.msra.mxu0 0.0
    %659 = vmatprep.subr.mxu0 0.0
    %660 = vmatpush1.msra.mxu0 0.0
    %661 = vmatprep.subr.mxu0 0.0
    %662 = vmatpush1.msra.mxu0 0.0
    %663 = vmatprep.subr.mxu0 0.0
    %664 = vmatpush1.msra.mxu0 0.0
    %665 = vmatprep.subr.mxu0 0.0
    %666 = vmatpush1.msra.mxu0 0.0
    %667 = vmatprep.subr.mxu0 0.0
    %668 = vmatpush1.msra.mxu0 0.0
    %669 = vmatprep.subr.mxu0 0.0
    %670 = vmatpush1.msra.mxu0 0.0
    %671 = vmatprep.subr.mxu0 0.0
    %672 = vmatpush1.msra.mxu0 0.0
    %673 = vmatprep.subr.mxu0 0.0
    %674 = vmatpush1.msra.mxu0 0.0
    %675 = vmatprep.subr.mxu0 0.0
    %676 = vmatpush1.msra.mxu0 0.0
    %677 = vmatprep.subr.mxu0 0.0
    %678 = vmatpush1.msra.mxu0 0.0
    %679 = vmatprep.subr.mxu0 0.0
    %680 = vmatpush1.msra.mxu0 0.0
    %681 = vmatprep.subr.mxu0 0.0
    %682 = vmatpush1.msra.mxu0 0.0
    %683 = vmatprep.subr.mxu0 0.0
    %684 = vmatpush1.msra.mxu0 0.0
    %685 = vmatprep.subr.mxu0 0.0
    %686 = vmatpush1.msra.mxu0 0.0
    %687 = vmatprep.subr.mxu0 0.0
    %688 = vmatpush1.msra.mxu0 0.0
    %689 = vmatprep.subr.mxu0 0.0
    %690 = vmatpush1.msra.mxu0 0.0
    %691 = vmatprep.subr.mxu0 0.0
    %692 = vmatpush1.msra.mxu0 0.0
    %693 = vmatprep.subr.mxu0 0.0
    %694 = vmatpush1.msra.mxu0 0.0
    %695 = vmatprep.subr.mxu0 0.0
    %696 = vmatpush1.msra.mxu0 0.0
    %697 = vmatprep.subr.mxu0 0.0
    %698 = vmatpush1.msra.mxu0 0.0
    %699 = vmatprep.subr.mxu0 0.0
    %700 = vmatpush1.msra.mxu0 0.0
    %701 = vmatprep.subr.mxu0 0.0
    %702 = vmatpush1.msra.mxu0 0.0
    %703 = vmatprep.subr.mxu0 0.0
    %704 = vmatpush1.msra.mxu0 0.0
    %705 = vmatprep.subr.mxu0 0.0
    %706 = vmatpush1.msra.mxu0 0.0
    %707 = vmatprep.subr.mxu0 0.0
    %708 = vmatpush1.msra.mxu0 0.0
    %709 = vmatprep.subr.mxu0 0.0
    %710 = vmatpush1.msra.mxu0 0.0
    %711 = vmatprep.mubr.f32.mxu0 0.0
    %712 = vmatmul.mubr.f32.gmra.mrb[0].mxu0 %v645
    %v713 = vpop.f32.mrb[0].mxu0
    %v714 = vadd.f32 0.0, %v713
    %v715 = vpop.f32.mrb[0].mxu0
    %716 = vdwg.mxu0
    %v717 = vadd.f32 %v178, %v714
    %v718 = vtanh.pop %v717
    %v720 = vsel %vm189, %v718, 0
    %722 = vmatprep.subr.mxu0 0.0
    %723 = vmatpush1.msra.mxu0 %v186
    %724 = vmatprep.subr.mxu0 0.0
    %725 = vmatpush1.msra.mxu0 %v187
    %726 = vmatprep.subr.mxu0 0.0
    %727 = vmatpush1.msra.mxu0 %v195
    %728 = vmatprep.subr.mxu0 0.0
    %729 = vmatpush1.msra.mxu0 0.0
    %730 = vmatprep.subr.mxu0 0.0
    %731 = vmatpush1.msra.mxu0 0.0
    %732 = vmatprep.subr.mxu0 0.0
    %733 = vmatpush1.msra.mxu0 0.0
    %734 = vmatprep.subr.mxu0 0.0
    %735 = vmatpush1.msra.mxu0 0.0
    %736 = vmatprep.subr.mxu0 0.0
    %737 = vmatpush1.msra.mxu0 0.0
    %738 = vmatprep.subr.mxu0 0.0
    %739 = vmatpush1.msra.mxu0 0.0
    %740 = vmatprep.subr.mxu0 0.0
    %741 = vmatpush1.msra.mxu0 0.0
    %742 = vmatprep.subr.mxu0 0.0
    %743 = vmatpush1.msra.mxu0 0.0
    %744 = vmatprep.subr.mxu0 0.0
    %745 = vmatpush1.msra.mxu0 0.0
    %746 = vmatprep.subr.mxu0 0.0
    %747 = vmatpush1.msra.mxu0 0.0
    %748 = vmatprep.subr.mxu0 0.0
    %749 = vmatpush1.msra.mxu0 0.0
    %750 = vmatprep.subr.mxu0 0.0
    %751 = vmatpush1.msra.mxu0 0.0
    %752 = vmatprep.subr.mxu0 0.0
    %753 = vmatpush1.msra.mxu0 0.0
    %754 = vmatprep.subr.mxu0 0.0
    %755 = vmatpush1.msra.mxu0 0.0
    %756 = vmatprep.subr.mxu0 0.0
    %757 = vmatpush1.msra.mxu0 0.0
    %758 = vmatprep.subr.mxu0 0.0
    %759 = vmatpush1.msra.mxu0 0.0
    %760 = vmatprep.subr.mxu0 0.0
    %761 = vmatpush1.msra.mxu0 0.0
    %762 = vmatprep.subr.mxu0 0.0
    %763 = vmatpush1.msra.mxu0 0.0
    %764 = vmatprep.subr.mxu0 0.0
    %765 = vmatpush1.msra.mxu0 0.0
    %766 = vmatprep.subr.mxu0 0.0
    %767 = vmatpush1.msra.mxu0 0.0
    %768 = vmatprep.subr.mxu0 0.0
    %769 = vmatpush1.msra.mxu0 0.0
    %770 = vmatprep.subr.mxu0 0.0
    %771 = vmatpush1.msra.mxu0 0.0
    %772 = vmatprep.subr.mxu0 0.0
    %773 = vmatpush1.msra.mxu0 0.0
    %774 = vmatprep.subr.mxu0 0.0
    %775 = vmatpush1.msra.mxu0 0.0
    %776 = vmatprep.subr.mxu0 0.0
    %777 = vmatpush1.msra.mxu0 0.0
    %778 = vmatprep.subr.mxu0 0.0
    %779 = vmatpush1.msra.mxu0 0.0
    %780 = vmatprep.subr.mxu0 0.0
    %781 = vmatpush1.msra.mxu0 0.0
    %782 = vmatprep.subr.mxu0 0.0
    %783 = vmatpush1.msra.mxu0 0.0
    %784 = vmatprep.subr.mxu0 0.0
    %785 = vmatpush1.msra.mxu0 0.0
    %786 = vmatprep.mubr.f32.mxu0 0.0
    %787 = vmatmul.mubr.f32.gmra.mrb[0].mxu0 %v720
    %v788 = vpop.f32.mrb[0].mxu0
    %v789 = vadd.f32 0.0, %v788
    %v790 = vpop.f32.mrb[0].mxu0
    %791 = vdwg.mxu0
    %v792 = vadd.f32 %v183, %v789
    %v793 = vtanh.pop %v792
    %v794 = vld [vmem:[%s5] sm:$0xff]
    %v795 = vld [vmem:[%s5 + $0x8] sm:$0xff]
    %v796 = vld [vmem:[%s5 + $0x10] sm:$0xf]
    %v798 = vsel %vm189, %v793, 0
    %v801 = vsel %vm193, %v796, 0
    %803 = vmatprep.subr.mxu0 0.0
    %804 = vmatpush1.msra.mxu0 %v794
    %805 = vmatprep.subr.mxu0 0.0
    %806 = vmatpush1.msra.mxu0 %v795
    %807 = vmatprep.subr.mxu0 0.0
    %808 = vmatpush1.msra.mxu0 %v801
    %809 = vmatprep.subr.mxu0 0.0
    %810 = vmatpush1.msra.mxu0 0.0
    %811 = vmatprep.subr.mxu0 0.0
    %812 = vmatpush1.msra.mxu0 0.0
    %813 = vmatprep.subr.mxu0 0.0
    %814 = vmatpush1.msra.mxu0 0.0
    %815 = vmatprep.subr.mxu0 0.0
    %816 = vmatpush1.msra.mxu0 0.0
    %817 = vmatprep.subr.mxu0 0.0
    %818 = vmatpush1.msra.mxu0 0.0
    %819 = vmatprep.subr.mxu0 0.0
    %820 = vmatpush1.msra.mxu0 0.0
    %821 = vmatprep.subr.mxu0 0.0
    %822 = vmatpush1.msra.mxu0 0.0
    %823 = vmatprep.subr.mxu0 0.0
    %824 = vmatpush1.msra.mxu0 0.0
    %825 = vmatprep.subr.mxu0 0.0
    %826 = vmatpush1.msra.mxu0 0.0
    %827 = vmatprep.subr.mxu0 0.0
    %828 = vmatpush1.msra.mxu0 0.0
    %829 = vmatprep.subr.mxu0 0.0
    %830 = vmatpush1.msra.mxu0 0.0
    %831 = vmatprep.subr.mxu0 0.0
    %832 = vmatpush1.msra.mxu0 0.0
    %833 = vmatprep.subr.mxu0 0.0
    %834 = vmatpush1.msra.mxu0 0.0
    %835 = vmatprep.subr.mxu0 0.0
    %836 = vmatpush1.msra.mxu0 0.0
    %837 = vmatprep.subr.mxu0 0.0
    %838 = vmatpush1.msra.mxu0 0.0
    %839 = vmatprep.subr.mxu0 0.0
    %840 = vmatpush1.msra.mxu0 0.0
    %841 = vmatprep.subr.mxu0 0.0
    %842 = vmatpush1.msra.mxu0 0.0
    %843 = vmatprep.subr.mxu0 0.0
    %844 = vmatpush1.msra.mxu0 0.0
    %845 = vmatprep.subr.mxu0 0.0
    %846 = vmatpush1.msra.mxu0 0.0
    %847 = vmatprep.subr.mxu0 0.0
    %848 = vmatpush1.msra.mxu0 0.0
    %849 = vmatprep.subr.mxu0 0.0
    %850 = vmatpush1.msra.mxu0 0.0
    %851 = vmatprep.subr.mxu0 0.0
    %852 = vmatpush1.msra.mxu0 0.0
    %853 = vmatprep.subr.mxu0 0.0
    %854 = vmatpush1.msra.mxu0 0.0
    %855 = vmatprep.subr.mxu0 0.0
    %856 = vmatpush1.msra.mxu0 0.0
    %857 = vmatprep.subr.mxu0 0.0
    %858 = vmatpush1.msra.mxu0 0.0
    %859 = vmatprep.subr.mxu0 0.0
    %860 = vmatpush1.msra.mxu0 0.0
    %861 = vmatprep.subr.mxu0 0.0
    %862 = vmatpush1.msra.mxu0 0.0
    %863 = vmatprep.subr.mxu0 0.0
    %864 = vmatpush1.msra.mxu0 0.0
    %865 = vmatprep.subr.mxu0 0.0
    %866 = vmatpush1.msra.mxu0 0.0
    %867 = vmatprep.mubr.f32.mxu0 0.0
    %868 = vmatmul.mubr.f32.gmra.mrb[0].mxu0 %v798
    %v869 = vpop.f32.mrb[0].mxu0
    %v870 = vadd.f32 0.0, %v869
    %v871 = vpop.f32.mrb[0].mxu0
    %872 = vdwg.mxu0
    %v873 = vld [vmem:[%s7] sm:$0x3]
    %v874 = vld [vmem:[%s6] sm:$0xff]
    %876 = vset.pattern.permute.xlu0 0
    %877 = vperm.xlu0 %876, %v870
    %v878 = vpop.permute.xlu0 %877
    %v880 = vmul.f32 %v878, %v874
    %v881 = vld [vmem:[%s1] sm:$0x3]
    %v882 = vld [vmem:[%s8] sm:$0xf]
    %vm883 = vcmask 31744
    %v885 = vsel %vm883, %v881, 0
    %v888 = vsel %vm193, %v882, 0
    %890 = vmatprep.subr.mxu0 0.0
    %891 = vmatpush1.msra.mxu0 %v888
    %892 = vmatprep.subr.mxu0 0.0
    %893 = vmatpush1.msra.mxu0 0.0
    %894 = vmatprep.subr.mxu0 0.0
    %895 = vmatpush1.msra.mxu0 0.0
    %896 = vmatprep.subr.mxu0 0.0
    %897 = vmatpush1.msra.mxu0 0.0
    %898 = vmatprep.subr.mxu0 0.0
    %899 = vmatpush1.msra.mxu0 0.0
    %900 = vmatprep.subr.mxu0 0.0
    %901 = vmatpush1.msra.mxu0 0.0
    %902 = vmatprep.subr.mxu0 0.0
    %903 = vmatpush1.msra.mxu0 0.0
    %904 = vmatprep.subr.mxu0 0.0
    %905 = vmatpush1.msra.mxu0 0.0
    %906 = vmatprep.subr.mxu0 0.0
    %907 = vmatpush1.msra.mxu0 0.0
    %908 = vmatprep.subr.mxu0 0.0
    %909 = vmatpush1.msra.mxu0 0.0
    %910 = vmatprep.subr.mxu0 0.0
    %911 = vmatpush1.msra.mxu0 0.0
    %912 = vmatprep.subr.mxu0 0.0
    %913 = vmatpush1.msra.mxu0 0.0
    %914 = vmatprep.subr.mxu0 0.0
    %915 = vmatpush1.msra.mxu0 0.0
    %916 = vmatprep.subr.mxu0 0.0
    %917 = vmatpush1.msra.mxu0 0.0
    %918 = vmatprep.subr.mxu0 0.0
    %919 = vmatpush1.msra.mxu0 0.0
    %920 = vmatprep.subr.mxu0 0.0
    %921 = vmatpush1.msra.mxu0 0.0
    %922 = vmatprep.subr.mxu0 0.0
    %923 = vmatpush1.msra.mxu0 0.0
    %924 = vmatprep.subr.mxu0 0.0
    %925 = vmatpush1.msra.mxu0 0.0
    %926 = vmatprep.subr.mxu0 0.0
    %927 = vmatpush1.msra.mxu0 0.0
    %928 = vmatprep.subr.mxu0 0.0
    %929 = vmatpush1.msra.mxu0 0.0
    %930 = vmatprep.subr.mxu0 0.0
    %931 = vmatpush1.msra.mxu0 0.0
    %932 = vmatprep.subr.mxu0 0.0
    %933 = vmatpush1.msra.mxu0 0.0
    %934 = vmatprep.subr.mxu0 0.0
    %935 = vmatpush1.msra.mxu0 0.0
    %936 = vmatprep.subr.mxu0 0.0
    %937 = vmatpush1.msra.mxu0 0.0
    %938 = vmatprep.subr.mxu0 0.0
    %939 = vmatpush1.msra.mxu0 0.0
    %940 = vmatprep.subr.mxu0 0.0
    %941 = vmatpush1.msra.mxu0 0.0
    %942 = vmatprep.subr.mxu0 0.0
    %943 = vmatpush1.msra.mxu0 0.0
    %944 = vmatprep.subr.mxu0 0.0
    %945 = vmatpush1.msra.mxu0 0.0
    %946 = vmatprep.subr.mxu0 0.0
    %947 = vmatpush1.msra.mxu0 0.0
    %948 = vmatprep.subr.mxu0 0.0
    %949 = vmatpush1.msra.mxu0 0.0
    %950 = vmatprep.subr.mxu0 0.0
    %951 = vmatpush1.msra.mxu0 0.0
    %952 = vmatprep.subr.mxu0 0.0
    %953 = vmatpush1.msra.mxu0 0.0
    %954 = vmatprep.mubr.f32.mxu0 0.0
    %955 = vmatmul.mubr.f32.gmra.mrb[0].mxu0 %v885
    %v956 = vpop.f32.mrb[0].mxu0
    %v957 = vadd.f32 0.0, %v956
    %v958 = vpop.f32.mrb[0].mxu0
    %959 = vdwg.mxu0
    %vm960 = vcmask 64512
    %v962 = vsel %vm960, %v873, 0
    %964 = vmatprep.subr.mxu0 0.0
    %965 = vmatpush1.msra.mxu0 %v880
    %966 = vmatprep.subr.mxu0 0.0
    %967 = vmatpush1.msra.mxu0 0.0
    %968 = vmatprep.subr.mxu0 0.0
    %969 = vmatpush1.msra.mxu0 0.0
    %970 = vmatprep.subr.mxu0 0.0
    %971 = vmatpush1.msra.mxu0 0.0
    %972 = vmatprep.subr.mxu0 0.0
    %973 = vmatpush1.msra.mxu0 0.0
    %974 = vmatprep.subr.mxu0 0.0
    %975 = vmatpush1.msra.mxu0 0.0
    %976 = vmatprep.subr.mxu0 0.0
    %977 = vmatpush1.msra.mxu0 0.0
    %978 = vmatprep.subr.mxu0 0.0
    %979 = vmatpush1.msra.mxu0 0.0
    %980 = vmatprep.subr.mxu0 0.0
    %981 = vmatpush1.msra.mxu0 0.0
    %982 = vmatprep.subr.mxu0 0.0
    %983 = vmatpush1.msra.mxu0 0.0
    %984 = vmatprep.subr.mxu0 0.0
    %985 = vmatpush1.msra.mxu0 0.0
    %986 = vmatprep.subr.mxu0 0.0
    %987 = vmatpush1.msra.mxu0 0.0
    %988 = vmatprep.subr.mxu0 0.0
    %989 = vmatpush1.msra.mxu0 0.0
    %990 = vmatprep.subr.mxu0 0.0
    %991 = vmatpush1.msra.mxu0 0.0
    %992 = vmatprep.subr.mxu0 0.0
    %993 = vmatpush1.msra.mxu0 0.0
    %994 = vmatprep.subr.mxu0 0.0
    %995 = vmatpush1.msra.mxu0 0.0
    %996 = vmatprep.subr.mxu0 0.0
    %997 = vmatpush1.msra.mxu0 0.0
    %998 = vmatprep.subr.mxu0 0.0
    %999 = vmatpush1.msra.mxu0 0.0
    %1000 = vmatprep.subr.mxu0 0.0
    %1001 = vmatpush1.msra.mxu0 0.0
    %1002 = vmatprep.subr.mxu0 0.0
    %1003 = vmatpush1.msra.mxu0 0.0
    %1004 = vmatprep.subr.mxu0 0.0
    %1005 = vmatpush1.msra.mxu0 0.0
    %1006 = vmatprep.subr.mxu0 0.0
    %1007 = vmatpush1.msra.mxu0 0.0
    %1008 = vmatprep.subr.mxu0 0.0
    %1009 = vmatpush1.msra.mxu0 0.0
    %1010 = vmatprep.subr.mxu0 0.0
    %1011 = vmatpush1.msra.mxu0 0.0
    %1012 = vmatprep.subr.mxu0 0.0
    %1013 = vmatpush1.msra.mxu0 0.0
    %1014 = vmatprep.subr.mxu0 0.0
    %1015 = vmatpush1.msra.mxu0 0.0
    %1016 = vmatprep.subr.mxu0 0.0
    %1017 = vmatpush1.msra.mxu0 0.0
    %1018 = vmatprep.subr.mxu0 0.0
    %1019 = vmatpush1.msra.mxu0 0.0
    %1020 = vmatprep.subr.mxu0 0.0
    %1021 = vmatpush1.msra.mxu0 0.0
    %1022 = vmatprep.subr.mxu0 0.0
    %1023 = vmatpush1.msra.mxu0 0.0
    %1024 = vmatprep.subr.mxu0 0.0
    %1025 = vmatpush1.msra.mxu0 0.0
    %1026 = vmatprep.subr.mxu0 0.0
    %1027 = vmatpush1.msra.mxu0 0.0
    %1028 = vmatprep.mubr.f32.mxu0 0.0
    %1029 = vmatmul.mubr.f32.gmra.mrb[0].mxu0 %v962
    %v1030 = vpop.f32.mrb[0].mxu0
    %v1031 = vadd.f32 %v957, %v1030
    %v1032 = vpop.f32.mrb[0].mxu0
    %1033 = vdwg.mxu0
    %v1034 = vld [vmem:[%s9] sm:$0x1]
    %v1036 = vlaneseq
    %v1037 = vshrl.u32 %v1036, 7
    %v1038 = vsub.s32 0, %v1037
    %v1039 = vrot.slane %v1034, %v1038
    %v1041 = vadd.f32 %v1031, %v1039
    %vm1042 = vcmask 33792
    %v1043 = vsel %vm1042, %v1041, -inf
    %1044 = vmax.xlane.f32.xlu0 %v1043
    %v1045 = vpop.xlane.xlu0 %1044
    %v1046 = vsub.f32 %v1041, %v1045
    %v1047 = vmul.f32 %v1046, 1.442695
    %v1048 = vpow.pop %v1047
    %v1049 = vsel %vm1042, %v1048, 0.0
    %1050 = vadd.xlane.f32.xlu0 %v1049
    %v1051 = vpop.xlane.xlu0 %1050
    %v1052 = vrcp.pop %v1051
    %v1053 = vmul.f32 %v1048, %v1052
    %1054 = vst.msk [vmem:[#allocation2] sm:$0x3] %vm1042, %v1053
    // Predicated region
    $region42: #{decision_network_rnn.1} parent=1 // pred_check
      _
    $region43: #{decision_network_rnn.1} parent=1 // pred_check_branch
      %1056 = sbr.rel (0) target = $region45
    $region44: #{decision_network_rnn.1} parent=1 // pred_region
      %s1058 = ssub.s32 32, 32
      %1059 = vsyncadd [#allocation3], %s1058
      %s1061 = sshll.u32 [#allocation2], 4
      %s1062 = int_to_ptr.vmem [resolvable:$true] %s1061
      %1064 = dma.vmem_to_hbm [thread:$0]  %s1062, 32, %s10, [#allocation3]
    $region45: #{decision_network_rnn.1} parent=1 // pred_fallthru
      _
    // Predicated region
    $region46: #{decision_network_rnn.1} parent=1 // pred_check
      _
    $region47: #{decision_network_rnn.1} parent=1 // pred_check_branch
      %1066 = sbr.rel (0) target = $region49
    $region48: #{decision_network_rnn.1} parent=1 // pred_region
      %1067 = dma.done [#allocation3], 32
    $region49: #{decision_network_rnn.1} parent=1 // pred_fallthru
      _
    %1068 = vsyncpa [#allocation3], 1

</llo_original>
